<compile_context>
chip_gen: v7x
topology: tpu7x:2x2x1
jax: 0.10.0
libtpu: 0.0.40
codegen_flags: <defaults>
</compile_context>

<pallas_src>
import functools

import jax
import jax.numpy as jnp
from jax import lax
from jax.experimental import pallas as pl
from jax.experimental.pallas import tpu as pltpu


def _round_up(x, m):
    return ((x + m - 1) // m) * m


def _cdiv(a, b):
    return -(-a // b)


def _pick_tile(dim, cap, align):
    """Smallest align-multiple tile covering `dim` in ceil(dim/cap) tiles.

    Minimises padding waste (e.g. batch=300, cap=256 -> tile 152, padded 304)
    instead of always padding up to the cap.
    """
    cap = max(cap, align)
    n_tiles = max(1, _cdiv(dim, cap))
    per = _cdiv(dim, n_tiles)
    return min(_round_up(per, align), _round_up(cap, align))


def _nl_kernel(x_ref, w_ref, *rest, normalization, nk, out_scale, mxu_dtype):
    """One (i, j, k) grid step of the tiled normalized linear.

    rest = (o_ref, [stat_ref if 'std'], [acc_ref if nk > 1])
    """
    pos = 0
    o_ref = rest[pos]; pos += 1
    stat_ref = None
    if normalization == 'std':
        stat_ref = rest[pos]; pos += 1
    acc_ref = rest[pos] if nk > 1 else None

    i = pl.program_id(0)
    k = pl.program_id(2)

    x = x_ref[...]                      # (tm, tk), storage dtype
    w = w_ref[...]                      # (tn, tk), storage dtype
    if normalization == 'tanh':
        # tanh on the streaming weight tile -> EUP slot, no extra HBM pass.
        w = jnp.tanh(w)
    if mxu_dtype is not None:
        x = x.astype(mxu_dtype)
        w = w.astype(mxu_dtype)

    # Contract last dims of both operands: no transpose, f32 accumulation.
    prod = lax.dot_general(
        x, w,
        dimension_numbers=(((1,), (1,)), ((), ())),
        preferred_element_type=jnp.float32)

    if nk == 1:
        # Single-k fast path: no scratch accumulator, no init/epilogue.
        res = prod
        if out_scale is not None:
            res = res * out_scale
        o_ref[...] = res.astype(o_ref.dtype)
    else:
        @pl.when(k == 0)
        def _():
            acc_ref[...] = prod          # assign, don't zero-then-add

        @pl.when(k > 0)
        def _():
            acc_ref[...] += prod

        @pl.when(k == nk - 1)
        def _():
            res = acc_ref[...]
            if out_scale is not None:
                res = res * out_scale
            o_ref[...] = res.astype(o_ref.dtype)

    if stat_ref is not None:
        # Weight sum / sum-of-squares for the 'std' normalization, fused into
        # the matmul pass.  Accumulated only on the first batch tile (i == 0),
        # all other (i, j) stat blocks hold zeros; reduced in XLA afterwards.
        if nk > 1:
            @pl.when(k == 0)
            def _():
                stat_ref[...] = jnp.zeros_like(stat_ref)
        else:
            stat_ref[...] = jnp.zeros_like(stat_ref)

        @pl.when(i == 0)
        def _():
            wf = w_ref[...].astype(jnp.float32)   # original weight (not casted)
            s = jnp.sum(wf)
            q = jnp.sum(wf * wf)
            rows = lax.broadcasted_iota(jnp.int32, stat_ref.shape,
                                        len(stat_ref.shape) - 2)
            part = jnp.where(rows == 0, s, jnp.where(rows == 1, q, 0.0))
            stat_ref[...] += part


def normalized_linear(x, weight, bias=None, *, sigma, normalization='std',
                      use_bias=True, mxu_dtype=None):
    """Pallas equivalent of NormalizedLinear.forward.

    x:      (..., in_features)
    weight: (out_features, in_features)   (torch.nn.Linear convention)
    bias:   (out_features,)
    mxu_dtype: optionally cast MXU operands (e.g. jnp.bfloat16) on v6e/v7x.
    """
    if normalization not in ('std', 'tanh'):
        raise ValueError(f"unknown normalization: {normalization}")

    orig_shape = x.shape
    in_features = orig_shape[-1]
    out_features, in_w = weight.shape
    assert in_w == in_features
    x2 = x.reshape(-1, in_features)
    batch = x2.shape[0]

    out_dtype = x.dtype
    itemsize = jnp.dtype(x.dtype).itemsize
    w_itemsize = jnp.dtype(weight.dtype).itemsize
    out_itemsize = jnp.dtype(out_dtype).itemsize

    # ---- tile selection: big tiles, minimal padding, v7x-safe VMEM budget ----
    VMEM_BUDGET = 26 * 1024 * 1024   # double-buffered tiles + acc, fits v7x

    m_align = 8
    n_align = 256 if out_features >= 256 else 128   # 256: full MXU fill v6e/v7x
    k_align = 256 if in_features >= 256 else 128

    tm = _pick_tile(batch, 256, m_align)
    tn = _pick_tile(out_features, 1024, n_align)

    # Remaining budget for the K-dependent (double-buffered x / w) streams;
    # prefer tk == full K (single k grid step) whenever it fits.
    fixed = 2 * tm * tn * out_itemsize + tm * tn * 4 + (64 << 10)
    per_k = 2 * (tm * itemsize + tn * w_itemsize)
    tk_cap = max(k_align, ((VMEM_BUDGET - fixed) // per_k) // k_align * k_align)
    tk_cap = min(tk_cap, 2048)
    tk = _pick_tile(in_features, tk_cap, k_align)

    Bp = _round_up(batch, tm)
    Kp = _round_up(in_features, tk)
    Np = _round_up(out_features, tn)

    # v7x megacore: make sure at least one "parallel" axis has >= 2 tiles.
    if Bp // tm == 1 and Np // tn == 1 and Np >= 256:
        tn = _round_up(_cdiv(out_features, 2), 128)
        Np = _round_up(out_features, tn)

    gi, gj, gk = Bp // tm, Np // tn, Kp // tk
    nk = gk

    # ---- pad operands to tile multiples (zeros are numerically inert) -------
    xp = x2
    if (Bp, Kp) != (batch, in_features):
        xp = jnp.pad(x2, ((0, Bp - batch), (0, Kp - in_features)))
    wp = weight
    if (Np, Kp) != (out_features, in_features):
        wp = jnp.pad(weight, ((0, Np - out_features), (0, Kp - in_features)))

    out_scale = None
    if normalization == 'tanh':
        out_scale = float(sigma) / float(in_features) ** 0.5   # compile-time

    kernel = functools.partial(_nl_kernel, normalization=normalization,
                               nk=nk, out_scale=out_scale, mxu_dtype=mxu_dtype)

    in_specs = [
        pl.BlockSpec((tm, tk), lambda i, j, k: (i, k)),   # x tile
        pl.BlockSpec((tn, tk), lambda i, j, k: (j, k)),   # w tile
    ]
    if normalization == 'std':
        out_shape_arg = (
            jax.ShapeDtypeStruct((Bp, Np), out_dtype),
            jax.ShapeDtypeStruct((gi, gj, 8, 128), jnp.float32),  # weight stats
        )
        out_specs_arg = (
            pl.BlockSpec((tm, tn), lambda i, j, k: (i, j)),
            pl.BlockSpec((1, 1, 8, 128), lambda i, j, k: (i, j, 0, 0)),
        )
    else:
        out_shape_arg = jax.ShapeDtypeStruct((Bp, Np), out_dtype)
        out_specs_arg = pl.BlockSpec((tm, tn), lambda i, j, k: (i, j))

    scratch_shapes = [pltpu.VMEM((tm, tn), jnp.float32)] if nk > 1 else []

    cost = pl.CostEstimate(
        flops=2 * Bp * Np * Kp,
        transcendentals=(gi * Np * Kp if normalization == 'tanh' else 0),
        bytes_accessed=(gj * Bp * Kp * itemsize          # x re-streamed per j
                        + gi * Np * Kp * w_itemsize      # w re-streamed per i
                        + Bp * Np * out_itemsize),
    )

    outs = pl.pallas_call(
        kernel,
        out_shape=out_shape_arg,
        grid=(gi, gj, gk),
        in_specs=in_specs,
        out_specs=out_specs_arg,
        scratch_shapes=scratch_shapes,
        compiler_params=pltpu.CompilerParams(
            dimension_semantics=("parallel", "parallel", "arbitrary"),
            vmem_limit_bytes=48 * 1024 * 1024),
        cost_estimate=cost,
    )(xp, wp)

    # ---- tiny XLA epilogue on the (batch, out) result ------------------------
    if normalization == 'std':
        raw_p, stats = outs
        out = raw_p[:batch, :out_features].astype(jnp.float32)
        n_elems = out_features * in_features
        w_sum = jnp.sum(stats[:, :, 0, 0])
        w_sq = jnp.sum(stats[:, :, 1, 0])
        # torch.std default: unbiased (ddof=1) over all elements.
        var = (w_sq - w_sum * w_sum / n_elems) / (n_elems - 1)
        w_std = jnp.sqrt(jnp.maximum(var, 0.0))
        scale = jnp.asarray(sigma, jnp.float32) / (w_std * (in_features ** 0.5))
        out = out * scale
    else:
        out = outs[:batch, :out_features].astype(jnp.float32)
        # scale (sigma / sqrt(in)) already folded into the kernel epilogue

    if use_bias:
        b = bias.astype(jnp.float32)
        if normalization == 'std':
            if out_features > 1:
                b = b / jnp.std(b, ddof=1)
        else:
            b = jnp.tanh(b)
        out = out + b * sigma

    out = out.astype(out_dtype)
    return out.reshape(orig_shape[:-1] + (out_features,))


def _reference(x, weight, bias, *, sigma, normalization, use_bias):
    """Pure-JAX reference mirroring the PyTorch forward."""
    in_features = weight.shape[1]
    out_features = weight.shape[0]
    if normalization == 'std':
        w = weight / jnp.std(weight, ddof=1)
        b = bias / jnp.std(bias, ddof=1) if out_features > 1 else bias
    else:
        w = jnp.tanh(weight)
        b = jnp.tanh(bias)
    w = w * sigma / (in_features ** 0.5)
    b = b * sigma
    y = x @ w.T
    if use_bias:
        y = y + b
    return y


if __name__ == "__main__":
    sigma = 1.5
    key = jax.random.PRNGKey(0)
    kx, kw, kb = jax.random.split(key, 3)

    # Small shapes consistent with NormalizedLinear(in_features=32, out_features=64).
    batch, in_features, out_features = 8, 32, 64
    x = jax.random.normal(kx, (batch, in_features), dtype=jnp.float32)
    weight = jax.random.normal(kw, (out_features, in_features), dtype=jnp.float32)
    bias = jax.random.normal(kb, (out_features,), dtype=jnp.float32)

    # 'std' branch with bias (scale from in-kernel weight stats)
    out = jax.block_until_ready(
        normalized_linear(x, weight, bias, sigma=sigma,
                          normalization='std', use_bias=True))
    ref = _reference(x, weight, bias, sigma=sigma,
                     normalization='std', use_bias=True)
    assert out.shape == (batch, out_features)
    assert jnp.allclose(out, ref, atol=1e-4, rtol=1e-4), "mismatch (std)"

    # 'tanh' branch, no bias
    out2 = jax.block_until_ready(
        normalized_linear(x, weight, bias, sigma=sigma,
                          normalization='tanh', use_bias=False))
    ref2 = _reference(x, weight, bias, sigma=sigma,
                      normalization='tanh', use_bias=False)
    assert jnp.allclose(out2, ref2, atol=1e-4, rtol=1e-4), "mismatch (tanh)"

    # 'tanh' branch with bias
    out3 = jax.block_until_ready(
        normalized_linear(x, weight, bias, sigma=sigma,
                          normalization='tanh', use_bias=True))
    ref3 = _reference(x, weight, bias, sigma=sigma,
                      normalization='tanh', use_bias=True)
    assert jnp.allclose(out3, ref3, atol=1e-4, rtol=1e-4), "mismatch (tanh+bias)"

    # Multi-batch-tile case: exercises gi > 1 (i==0 stats guard), padding on
    # both K and N, and the padding-minimising tile picker.
    b2, i2, o2 = 272, 96, 200
    x4 = jax.random.normal(kx, (b2, i2), dtype=jnp.float32)
    w4 = jax.random.normal(kw, (o2, i2), dtype=jnp.float32)
    bb4 = jax.random.normal(kb, (o2,), dtype=jnp.float32)
    out4 = jax.block_until_ready(
        normalized_linear(x4, w4, bb4, sigma=0.7,
                          normalization='std', use_bias=True))
    ref4 = _reference(x4, w4, bb4, sigma=0.7,
                      normalization='std', use_bias=True)
    assert jnp.allclose(out4, ref4, atol=1e-3, rtol=1e-3), "mismatch (std, tiled)"

    print("KERNEL_OK")
</pallas_src>

<mosaic_0001>
module attributes {stable_mosaic.version = 11 : i64} {
  func.func @_nl_kernel(%arg0: i32, %arg1: i32, %arg2: i32, %arg3: memref<8x128xf32, #tpu.memory_space<vmem>>, %arg4: memref<128x128xf32, #tpu.memory_space<vmem>>, %arg5: memref<8x128xf32, #tpu.memory_space<vmem>>, %arg6: memref<1x1x8x128xf32, #tpu.memory_space<vmem>>) attributes {dimension_semantics = [#tpu.dimension_semantics<parallel>, #tpu.dimension_semantics<parallel>, #tpu.dimension_semantics<arbitrary>], iteration_bounds = array<i64: 1, 1, 1>, scalar_prefetch = 0 : i64, scratch_operands = 0 : i64, tpu.core_type = #tpu.core_type<tc>, window_params = [{transform_indices = @transform_0, window_bounds = array<i64: 8, 128>}, {transform_indices = @transform_1, window_bounds = array<i64: 128, 128>}, {transform_indices = @transform_2, window_bounds = array<i64: 8, 128>}, {transform_indices = @transform_3, window_bounds = array<i64: 1, 1, 8, 128>}]} {
    %c0 = arith.constant 0 : index
    %c0_0 = arith.constant 0 : index
    %0 = vector.load %arg3[%c0, %c0_0] : memref<8x128xf32, #tpu.memory_space<vmem>>, vector<8x128xf32>
    %c0_1 = arith.constant 0 : index
    %c0_2 = arith.constant 0 : index
    %1 = vector.load %arg4[%c0_1, %c0_2] : memref<128x128xf32, #tpu.memory_space<vmem>>, vector<128x128xf32>
    %cst = arith.constant dense<0.000000e+00> : vector<8x128xf32>
    %2 = tpu.matmul %0, %1, %cst {dimension_numbers = #tpu.dot_dimension_numbers<[1], [1], [0], [0], [0, 0, 1, 0], [], []>} : vector<8x128xf32>, vector<128x128xf32>, vector<8x128xf32> -> vector<8x128xf32>
    %c0_3 = arith.constant 0 : index
    %c0_4 = arith.constant 0 : index
    %3 = vector.load %arg5[%c0_3, %c0_4] : memref<8x128xf32, #tpu.memory_space<vmem>>, vector<8x128xf32>
    tpu.vector_store %arg5[%c0_3, %c0_4], %2 {strides = array<i32>} : memref<8x128xf32, #tpu.memory_space<vmem>>, vector<8x128xf32>,
    %cst_5 = arith.constant 0.000000e+00 : f32
    %4 = vector.broadcast %cst_5 : f32 to vector<1x1x8x128xf32>
    %c0_6 = arith.constant 0 : index
    %c0_7 = arith.constant 0 : index
    %c0_8 = arith.constant 0 : index
    %c0_9 = arith.constant 0 : index
    %5 = vector.load %arg6[%c0_6, %c0_7, %c0_8, %c0_9] : memref<1x1x8x128xf32, #tpu.memory_space<vmem>>, vector<1x1x8x128xf32>
    tpu.vector_store %arg6[%c0_6, %c0_7, %c0_8, %c0_9], %4 {strides = array<i32>} : memref<1x1x8x128xf32, #tpu.memory_space<vmem>>, vector<1x1x8x128xf32>,
    %c0_i32 = arith.constant 0 : i32
    %6 = arith.cmpi eq, %arg0, %c0_i32 : i32
    %7 = arith.extui %6 : i1 to i32
    %c0_i32_10 = arith.constant 0 : i32
    %8 = arith.cmpi ne, %7, %c0_i32_10 : i32
    scf.if %8 {
      %c0_11 = arith.constant 0 : index
      %c0_12 = arith.constant 0 : index
      %9 = vector.load %arg4[%c0_11, %c0_12] : memref<128x128xf32, #tpu.memory_space<vmem>>, vector<128x128xf32>
      %10 = vector.shape_cast %9 : vector<128x128xf32> to vector<1x128x128xf32>
      %cst_13 = arith.constant dense<0.000000e+00> : vector<1xf32>
      %11 = vector.multi_reduction <add>, %10, %cst_13 [1, 2] : vector<1x128x128xf32> to vector<1xf32>
      %12 = vector.shape_cast %11 : vector<1xf32> to vector<1x1x1xf32>
      %13 = vector.extract %12[0, 0, 0] : f32 from vector<1x1x1xf32>
      %14 = arith.mulf %9, %9 : vector<128x128xf32>
      %15 = vector.shape_cast %14 : vector<128x128xf32> to vector<1x128x128xf32>
      %cst_14 = arith.constant dense<0.000000e+00> : vector<1xf32>
      %16 = vector.multi_reduction <add>, %15, %cst_14 [1, 2] : vector<1x128x128xf32> to vector<1xf32>
      %17 = vector.shape_cast %16 : vector<1xf32> to vector<1x1x1xf32>
      %18 = vector.extract %17[0, 0, 0] : f32 from vector<1x1x1xf32>
      %19 = tpu.iota {dimensions = array<i32: 2>} : vector<1x1x8x128xi32>
      %c0_i32_15 = arith.constant 0 : i32
      %20 = vector.broadcast %c0_i32_15 : i32 to vector<1x1x8x128xi32>
      %21 = arith.cmpi eq, %19, %20 : vector<1x1x8x128xi32>
      %c1_i32 = arith.constant 1 : i32
      %22 = vector.broadcast %c1_i32 : i32 to vector<1x1x8x128xi32>
      %23 = arith.cmpi eq, %19, %22 : vector<1x1x8x128xi32>
      %cst_16 = arith.constant 0.000000e+00 : f32
      %24 = vector.broadcast %18 : f32 to vector<1x1x8x128xf32>
      %25 = vector.broadcast %cst_16 : f32 to vector<1x1x8x128xf32>
      %26 = arith.select %23, %24, %25 : vector<1x1x8x128xi1>, vector<1x1x8x128xf32>
      %27 = vector.broadcast %13 : f32 to vector<1x1x8x128xf32>
      %28 = arith.select %21, %27, %26 : vector<1x1x8x128xi1>, vector<1x1x8x128xf32>
      %c0_17 = arith.constant 0 : index
      %c0_18 = arith.constant 0 : index
      %c0_19 = arith.constant 0 : index
      %c0_20 = arith.constant 0 : index
      %29 = vector.load %arg6[%c0_17, %c0_18, %c0_19, %c0_20] : memref<1x1x8x128xf32, #tpu.memory_space<vmem>>, vector<1x1x8x128xf32>
      %30 = arith.addf %29, %28 : vector<1x1x8x128xf32>
      %c0_21 = arith.constant 0 : index
      %c0_22 = arith.constant 0 : index
      %c0_23 = arith.constant 0 : index
      %c0_24 = arith.constant 0 : index
      %31 = vector.load %arg6[%c0_21, %c0_22, %c0_23, %c0_24] : memref<1x1x8x128xf32, #tpu.memory_space<vmem>>, vector<1x1x8x128xf32>
      tpu.vector_store %arg6[%c0_21, %c0_22, %c0_23, %c0_24], %30 {strides = array<i32>} : memref<1x1x8x128xf32, #tpu.memory_space<vmem>>, vector<1x1x8x128xf32>,
    } else {
    }
    return
  }
  func.func @transform_0(%arg0: i32, %arg1: i32, %arg2: i32) -> (i32, i32) {
    %c0_i32 = arith.constant 0 : i32
    return %arg0, %arg2 : i32, i32
  }
  func.func @transform_1(%arg0: i32, %arg1: i32, %arg2: i32) -> (i32, i32) {
    %c0_i32 = arith.constant 0 : i32
    return %arg1, %arg2 : i32, i32
  }
  func.func @transform_2(%arg0: i32, %arg1: i32, %arg2: i32) -> (i32, i32) {
    %c0_i32 = arith.constant 0 : i32
    return %arg0, %arg1 : i32, i32
  }
  func.func @transform_3(%arg0: i32, %arg1: i32, %arg2: i32) -> (i32, i32, i32, i32) {
    %c0_i32 = arith.constant 0 : i32
    %c0_i32_0 = arith.constant 0 : i32
    %c0_i32_1 = arith.constant 0 : i32
    return %arg0, %arg1, %c0_i32, %c0_i32_0 : i32, i32, i32, i32
  }
}

</mosaic_0001>

<llo_original>
// kernel: tpu_custom_call.1
$region0: #{tpu_custom_call.1}
  #allocation0 [shape = 'u32[]', space=smem, size = 0x4, offset = 0x4, fixed_abs, tag = 'smem constant byte address 0x4 - core index']
  #allocation1 [shape = 'u32[144,128]{1,0:T(1,128)}', space=vmem, size = 0x12000, scoped, tag = 'internal scratch']
  %s0 = inlined_call_operand.hbm [shape: f32[8,128], index: 0, kind: input, shape index: {}]
  %s1 = inlined_call_operand.hbm [shape: f32[128,128], index: 1, kind: input, shape index: {}]
  %s2 = inlined_call_operand.hbm [shape: f32[8,128], index: 2, kind: output, shape index: {0}]
  %s3 = inlined_call_operand.hbm [shape: f32[1,1,8,128], index: 3, kind: output, shape index: {1}]
  %4 = xla_tuple %s2, %s3
  %s5 = sld [smem:[#allocation0]]
  $region38: #{tpu_custom_call.1} parent=0
    _
  %s7 = ssub.s32 1, %s5
  %s8 = scalar_select 0, %s7, %s5
  $region1: #{tpu_custom_call.1} parent=0
    #allocation2 [shape = 'u8[4096]{0}', space=vmem, size = 0x1000, scoped, tag = 'input window, operand 0, single buffered']
    #allocation3 [shape = 's32[1]{0}', space=sflag, size = 0x4, scoped, tag = 'scoped memory for tpu_custom_call.1']
    #allocation4 [shape = 's32[1]{0}', space=sflag, size = 0x4, scoped, tag = 'scoped memory for tpu_custom_call.1']
    #allocation5 [shape = 'u8[65536]{0}', space=vmem, size = 0x10000, scoped, tag = 'input window, operand 1, single buffered']
    #allocation6 [shape = 's32[1]{0}', space=sflag, size = 0x4, scoped, tag = 'scoped memory for tpu_custom_call.1']
    #allocation7 [shape = 'u8[4096]{0}', space=vmem, size = 0x1000, scoped, tag = 'output window, operand 0, single buffered']
    #allocation8 [shape = 'u8[4096]{0}', space=vmem, size = 0x1000, scoped, tag = 'output window, operand 1, single buffered']
    #allocation9 [shape = 's32[1]{0}', space=sflag, size = 0x4, scoped, tag = 'scoped memory for tpu_custom_call.1']
    %9 = vsyncpa [#allocation3], 0
    %10 = vsyncpa [#allocation6], 0
    %11 = vsyncpa [#allocation4], 0
    %12 = vsyncpa [#allocation9], 0
    // Predicated region
    $region2: #{tpu_custom_call.1} parent=1 // pred_check
      _
    $region3: #{tpu_custom_call.1} parent=1 // pred_check_branch
      %14 = sbr.rel (0) target = $region5
    $region4: #{tpu_custom_call.1} parent=1 // pred_region
      %s16 = ssub.s32 128, 128
      %17 = vsyncadd [#allocation3], %s16
      %s19 = sshll.u32 [#allocation2], 4
      %s20 = int_to_ptr.vmem [resolvable:$true] %s19
      %22 = dma.hbm_to_vmem [thread:$0]  %s0, 128, %s20, [#allocation3]
    $region5: #{tpu_custom_call.1} parent=1 // pred_fallthru
      _
    // Predicated region
    $region6: #{tpu_custom_call.1} parent=1 // pred_check
      _
    $region7: #{tpu_custom_call.1} parent=1 // pred_check_branch
      %24 = sbr.rel (0) target = $region9
    $region8: #{tpu_custom_call.1} parent=1 // pred_region
      %s26 = ssub.s32 2048, 2048
      %27 = vsyncadd [#allocation6], %s26
      %s28 = sshll.u32 [#allocation5], 4
      %s29 = int_to_ptr.vmem [resolvable:$true] %s28
      %34 = dma.hbm_to_vmem [thread:$0]  %s1, 2048, %s29, [#allocation6], 128, 128, 8
    $region9: #{tpu_custom_call.1} parent=1 // pred_fallthru
      _
    // Predicated region
    $region10: #{tpu_custom_call.1} parent=1 // pred_check
      _
    $region11: #{tpu_custom_call.1} parent=1 // pred_check_branch
      %36 = sbr.rel (0) target = $region13
    $region12: #{tpu_custom_call.1} parent=1 // pred_region
      %37 = dma.done [#allocation3], 128
    $region13: #{tpu_custom_call.1} parent=1 // pred_fallthru
      _
    // Predicated region
    $region14: #{tpu_custom_call.1} parent=1 // pred_check
      _
    $region15: #{tpu_custom_call.1} parent=1 // pred_check_branch
      %39 = sbr.rel (0) target = $region17
    $region16: #{tpu_custom_call.1} parent=1 // pred_region
      %40 = dma.done [#allocation6], 2048
    $region17: #{tpu_custom_call.1} parent=1 // pred_fallthru
      _
    %v41 = vld [vmem:[#allocation2] sm:$0xff]
    %v42 = vld [vmem:[#allocation5] sm:$0xff]
    %v43 = vld [vmem:[#allocation5 + $0x8] sm:$0xff]
    %v44 = vld [vmem:[#allocation5 + $0x10] sm:$0xff]
    %v45 = vld [vmem:[#allocation5 + $0x18] sm:$0xff]
    %v46 = vld [vmem:[#allocation5 + $0x20] sm:$0xff]
    %v47 = vld [vmem:[#allocation5 + $0x28] sm:$0xff]
    %v48 = vld [vmem:[#allocation5 + $0x30] sm:$0xff]
    %v49 = vld [vmem:[#allocation5 + $0x38] sm:$0xff]
    %v50 = vld [vmem:[#allocation5 + $0x40] sm:$0xff]
    %v51 = vld [vmem:[#allocation5 + $0x48] sm:$0xff]
    %v52 = vld [vmem:[#allocation5 + $0x50] sm:$0xff]
    %v53 = vld [vmem:[#allocation5 + $0x58] sm:$0xff]
    %v54 = vld [vmem:[#allocation5 + $0x60] sm:$0xff]
    %v55 = vld [vmem:[#allocation5 + $0x68] sm:$0xff]
    %v56 = vld [vmem:[#allocation5 + $0x70] sm:$0xff]
    %v57 = vld [vmem:[#allocation5 + $0x78] sm:$0xff]
    %58 = vmatprep.subr.mxu0 0.0
    %59 = vmatpush1.xpose.msra.mxu0 %v42
    %60 = vmatprep.subr.mxu0 0.0
    %61 = vmatpush1.xpose.msra.mxu0 %v43
    %62 = vmatprep.subr.mxu0 0.0
    %63 = vmatpush1.xpose.msra.mxu0 %v44
    %64 = vmatprep.subr.mxu0 0.0
    %65 = vmatpush1.xpose.msra.mxu0 %v45
    %66 = vmatprep.subr.mxu0 0.0
    %67 = vmatpush1.xpose.msra.mxu0 %v46
    %68 = vmatprep.subr.mxu0 0.0
    %69 = vmatpush1.xpose.msra.mxu0 %v47
    %70 = vmatprep.subr.mxu0 0.0
    %71 = vmatpush1.xpose.msra.mxu0 %v48
    %72 = vmatprep.subr.mxu0 0.0
    %73 = vmatpush1.xpose.msra.mxu0 %v49
    %74 = vmatprep.subr.mxu0 0.0
    %75 = vmatpush1.xpose.msra.mxu0 %v50
    %76 = vmatprep.subr.mxu0 0.0
    %77 = vmatpush1.xpose.msra.mxu0 %v51
    %78 = vmatprep.subr.mxu0 0.0
    %79 = vmatpush1.xpose.msra.mxu0 %v52
    %80 = vmatprep.subr.mxu0 0.0
    %81 = vmatpush1.xpose.msra.mxu0 %v53
    %82 = vmatprep.subr.mxu0 0.0
    %83 = vmatpush1.xpose.msra.mxu0 %v54
    %84 = vmatprep.subr.mxu0 0.0
    %85 = vmatpush1.xpose.msra.mxu0 %v55
    %86 = vmatprep.subr.mxu0 0.0
    %87 = vmatpush1.xpose.msra.mxu0 %v56
    %88 = vmatprep.subr.mxu0 0.0
    %89 = vmatpush1.xpose.msra.mxu0 %v57
    %90 = vmatprep.subr.mxu0 0.0
    %91 = vmatpush1.xpose.msra.mxu0 0.0
    %92 = vmatprep.subr.mxu0 0.0
    %93 = vmatpush1.xpose.msra.mxu0 0.0
    %94 = vmatprep.subr.mxu0 0.0
    %95 = vmatpush1.xpose.msra.mxu0 0.0
    %96 = vmatprep.subr.mxu0 0.0
    %97 = vmatpush1.xpose.msra.mxu0 0.0
    %98 = vmatprep.subr.mxu0 0.0
    %99 = vmatpush1.xpose.msra.mxu0 0.0
    %100 = vmatprep.subr.mxu0 0.0
    %101 = vmatpush1.xpose.msra.mxu0 0.0
    %102 = vmatprep.subr.mxu0 0.0
    %103 = vmatpush1.xpose.msra.mxu0 0.0
    %104 = vmatprep.subr.mxu0 0.0
    %105 = vmatpush1.xpose.msra.mxu0 0.0
    %106 = vmatprep.subr.mxu0 0.0
    %107 = vmatpush1.xpose.msra.mxu0 0.0
    %108 = vmatprep.subr.mxu0 0.0
    %109 = vmatpush1.xpose.msra.mxu0 0.0
    %110 = vmatprep.subr.mxu0 0.0
    %111 = vmatpush1.xpose.msra.mxu0 0.0
    %112 = vmatprep.subr.mxu0 0.0
    %113 = vmatpush1.xpose.msra.mxu0 0.0
    %114 = vmatprep.subr.mxu0 0.0
    %115 = vmatpush1.xpose.msra.mxu0 0.0
    %116 = vmatprep.subr.mxu0 0.0
    %117 = vmatpush1.xpose.msra.mxu0 0.0
    %118 = vmatprep.subr.mxu0 0.0
    %119 = vmatpush1.xpose.msra.mxu0 0.0
    %120 = vmatprep.subr.mxu0 0.0
    %121 = vmatpush1.xpose.msra.mxu0 0.0
    %122 = vmatprep.mubr.f32.mxu0 0.0
    %123 = vmatmul.mubr.f32.gmra.mrb[0].mxu0 %v41
    %v124 = vpop.f32.mrb[0].mxu0
    %v125 = vadd.f32 0.0, %v124
    %v126 = vpop.f32.mrb[0].mxu0
    %127 = vdwg.mxu0
    %128 = vst [vmem:[#allocation7] sm:$0xff] %v125
    %129 = vst [vmem:[#allocation8] sm:$0xff] 0.0
    %p130 = scmp.eq.s32.totalorder 0, 0
    // Predicated region
    $region18: #{tpu_custom_call.1} parent=1 // pred_check
      %p131 = pneg %p130
    $region19: #{tpu_custom_call.1} parent=1 // pred_check_branch
      %133 = sbr.rel (%p131) target = $region21
    $region20: #{tpu_custom_call.1} parent=1 // pred_region
      %v134 = vld [vmem:[#allocation5] sm:$0xff]
      %v135 = vld [vmem:[#allocation5 + $0x8] sm:$0xff]
      %v136 = vld [vmem:[#allocation5 + $0x10] sm:$0xff]
      %v137 = vld [vmem:[#allocation5 + $0x18] sm:$0xff]
      %v138 = vld [vmem:[#allocation5 + $0x20] sm:$0xff]
      %v139 = vld [vmem:[#allocation5 + $0x28] sm:$0xff]
      %v140 = vld [vmem:[#allocation5 + $0x30] sm:$0xff]
      %v141 = vld [vmem:[#allocation5 + $0x38] sm:$0xff]
      %v142 = vld [vmem:[#allocation5 + $0x40] sm:$0xff]
      %v143 = vld [vmem:[#allocation5 + $0x48] sm:$0xff]
      %v144 = vld [vmem:[#allocation5 + $0x50] sm:$0xff]
      %v145 = vld [vmem:[#allocation5 + $0x58] sm:$0xff]
      %v146 = vld [vmem:[#allocation5 + $0x60] sm:$0xff]
      %v147 = vld [vmem:[#allocation5 + $0x68] sm:$0xff]
      %v148 = vld [vmem:[#allocation5 + $0x70] sm:$0xff]
      %v149 = vld [vmem:[#allocation5 + $0x78] sm:$0xff]
      %v150 = vadd.f32 %v134, %v135
      %v151 = vadd.f32 %v150, %v136
      %v152 = vadd.f32 %v151, %v137
      %v153 = vadd.f32 %v152, %v138
      %v154 = vadd.f32 %v153, %v139
      %v155 = vadd.f32 %v154, %v140
      %v156 = vadd.f32 %v155, %v141
      %v157 = vadd.f32 %v156, %v142
      %v158 = vadd.f32 %v157, %v143
      %v159 = vadd.f32 %v158, %v144
      %v160 = vadd.f32 %v159, %v145
      %v161 = vadd.f32 %v160, %v146
      %v162 = vadd.f32 %v161, %v147
      %v163 = vadd.f32 %v162, %v148
      %v164 = vadd.f32 %v163, %v149
      %165 = vadd.xlane.f32.xlu0 %v164
      %v166 = vpop.xlane.xlu0 %165
      %v167 = vrot.slane %v166, 4
      %v168 = vadd.f32 %v166, %v167
      %v169 = vrot.slane %v168, 2
      %v170 = vadd.f32 %v168, %v169
      %v171 = vrot.slane %v170, 1
      %v172 = vadd.f32 %v170, %v171
      %s173 = vtos %v172
      %v174 = vmul.f32 %v134, %v134
      %v175 = vmul.f32 %v135, %v135
      %v176 = vmul.f32 %v136, %v136
      %v177 = vmul.f32 %v137, %v137
      %v178 = vmul.f32 %v138, %v138
      %v179 = vmul.f32 %v139, %v139
      %v180 = vmul.f32 %v140, %v140
      %v181 = vmul.f32 %v141, %v141
      %v182 = vmul.f32 %v142, %v142
      %v183 = vmul.f32 %v143, %v143
      %v184 = vmul.f32 %v144, %v144
      %v185 = vmul.f32 %v145, %v145
      %v186 = vmul.f32 %v146, %v146
      %v187 = vmul.f32 %v147, %v147
      %v188 = vmul.f32 %v148, %v148
      %v189 = vmul.f32 %v149, %v149
      %v190 = vadd.f32 %v174, %v175
      %v191 = vadd.f32 %v190, %v176
      %v192 = vadd.f32 %v191, %v177
      %v193 = vadd.f32 %v192, %v178
      %v194 = vadd.f32 %v193, %v179
      %v195 = vadd.f32 %v194, %v180
      %v196 = vadd.f32 %v195, %v181
      %v197 = vadd.f32 %v196, %v182
      %v198 = vadd.f32 %v197, %v183
      %v199 = vadd.f32 %v198, %v184
      %v200 = vadd.f32 %v199, %v185
      %v201 = vadd.f32 %v200, %v186
      %v202 = vadd.f32 %v201, %v187
      %v203 = vadd.f32 %v202, %v188
      %v204 = vadd.f32 %v203, %v189
      %205 = vadd.xlane.f32.xlu0 %v204
      %v206 = vpop.xlane.xlu0 %205
      %v207 = vrot.slane %v206, 4
      %v208 = vadd.f32 %v206, %v207
      %v209 = vrot.slane %v208, 2
      %v210 = vadd.f32 %v208, %v209
      %v211 = vrot.slane %v210, 1
      %v212 = vadd.f32 %v210, %v211
      %s213 = vtos %v212
      %v214 = vlaneseq
      %v215 = vshrl.u32 %v214, 7
      %vm216 = vcmp.eq.s32.totalorder %v215, 0
      %vm217 = vcmp.eq.s32.totalorder %v215, 1
      %v218 = vstv %s213
      %v219 = vsel %vm217, %v218, 0.0
      %v220 = vstv %s173
      %v221 = vsel %vm216, %v220, %v219
      %v222 = vld [vmem:[#allocation8] sm:$0xff]
      %v223 = vadd.f32 %v222, %v221
      %224 = vst [vmem:[#allocation8] sm:$0xff] %v223
    $region21: #{tpu_custom_call.1} parent=1 // pred_fallthru
      _
    // Predicated region
    $region22: #{tpu_custom_call.1} parent=1 // pred_check
      _
    $region23: #{tpu_custom_call.1} parent=1 // pred_check_branch
      %226 = sbr.rel (0) target = $region25
    $region24: #{tpu_custom_call.1} parent=1 // pred_region
      %s228 = ssub.s32 128, 128
      %229 = vsyncadd [#allocation4], %s228
      %s231 = sshll.u32 [#allocation7], 4
      %s232 = int_to_ptr.vmem [resolvable:$true] %s231
      %234 = dma.vmem_to_hbm [thread:$0]  %s232, 128, %s2, [#allocation4]
    $region25: #{tpu_custom_call.1} parent=1 // pred_fallthru
      _
    // Predicated region
    $region26: #{tpu_custom_call.1} parent=1 // pred_check
      _
    $region27: #{tpu_custom_call.1} parent=1 // pred_check_branch
      %236 = sbr.rel (0) target = $region29
    $region28: #{tpu_custom_call.1} parent=1 // pred_region
      %s238 = ssub.s32 128, 128
      %239 = vsyncadd [#allocation9], %s238
      %s241 = sshll.u32 [#allocation8], 4
      %s242 = int_to_ptr.vmem [resolvable:$true] %s241
      %244 = dma.vmem_to_hbm [thread:$0]  %s242, 128, %s3, [#allocation9]
    $region29: #{tpu_custom_call.1} parent=1 // pred_fallthru
      _
    // Predicated region
    $region30: #{tpu_custom_call.1} parent=1 // pred_check
      _
    $region31: #{tpu_custom_call.1} parent=1 // pred_check_branch
      %246 = sbr.rel (0) target = $region33
    $region32: #{tpu_custom_call.1} parent=1 // pred_region
      %247 = dma.done [#allocation4], 128
    $region33: #{tpu_custom_call.1} parent=1 // pred_fallthru
      _
    // Predicated region
    $region34: #{tpu_custom_call.1} parent=1 // pred_check
      _
    $region35: #{tpu_custom_call.1} parent=1 // pred_check_branch
      %249 = sbr.rel (0) target = $region37
    $region36: #{tpu_custom_call.1} parent=1 // pred_region
      %250 = dma.done [#allocation9], 128
    $region37: #{tpu_custom_call.1} parent=1 // pred_fallthru
      _
    %251 = vsyncpa [#allocation3], 1
    %252 = vsyncpa [#allocation6], 1
    %253 = vsyncpa [#allocation4], 1
    %254 = vsyncpa [#allocation9], 1

</llo_original>
